<compile_context>
chip_gen: v5e
topology: v5e:2x2
jax: 0.10.0
libtpu: 0.0.40
codegen_flags: <defaults>
</compile_context>

<pallas_src>
import jax
import jax.numpy as jnp
from jax.experimental import pallas as pl
from jax.experimental.pallas import tpu as pltpu


def _fact_encoder_kernel(x_ref, wm_ref, wv_ref, mem_ref, val_ref):
    # One LHS tile, two MXU matmuls, f32 accumulation, lane-dense stores.
    x = x_ref[...]
    mem_ref[...] = jnp.dot(
        x, wm_ref[...], preferred_element_type=jnp.float32
    ).astype(mem_ref.dtype)
    val_ref[...] = jnp.dot(
        x, wv_ref[...], preferred_element_type=jnp.float32
    ).astype(val_ref.dtype)


def _round_up(x, m):
    return ((x + m - 1) // m) * m


def _cdiv(a, b):
    return -(-a // b)


def _vmem_capacity_bytes():
    try:
        return int(pltpu.get_tpu_info().vmem_capacity_bytes)
    except Exception:
        return 64 * 1024 * 1024  # conservative default = v7x per-TC VMEM


def prepare_fact_encoder_weights(w_mem, w_val, compute_dtype=jnp.bfloat16):
    """One-time prep: PyTorch-layout (embed, input) weights -> (input, embed).

    Hoisted out of the per-call path (transpose + optional bf16 cast happen
    once, not per forward).
    """
    wm_t, wv_t = w_mem.T, w_val.T
    if compute_dtype is not None:
        wm_t = wm_t.astype(compute_dtype)
        wv_t = wv_t.astype(compute_dtype)
    return wm_t, wv_t


def fact_encoder_fused(
    context,
    wm_t,
    wv_t,
    *,
    tm=1024,
    compute_dtype=jnp.bfloat16,
    out_dtype=None,
    vmem_budget_bytes=None,
    vmem_limit_bytes=None,
):
    """context: (..., input_size); wm_t / wv_t: (input_size, embed_size)."""
    *lead, input_size = context.shape
    K, E = wm_t.shape
    assert K == input_size and wv_t.shape == (K, E)

    out_dtype = context.dtype if out_dtype is None else out_dtype

    if compute_dtype is not None:
        context = context.astype(compute_dtype)
        wm_t = wm_t.astype(compute_dtype)
        wv_t = wv_t.astype(compute_dtype)

    x2d = context.reshape(-1, input_size)
    M = x2d.shape[0]

    x_item = jnp.dtype(x2d.dtype).itemsize
    w_item = jnp.dtype(wm_t.dtype).itemsize
    o_item = jnp.dtype(out_dtype).itemsize

    # Min second-to-last tile dim for the compute dtype (8 f32, 16 bf16, 32 i8).
    sub = max(8, 32 // max(1, x_item))

    # Generation-aware VMEM handling (v7x: 64 MiB/TC, v5e/v6e: 128 MiB).
    vmem_cap = _vmem_capacity_bytes()
    if vmem_budget_bytes is None:
        vmem_budget_bytes = min(vmem_cap * 3 // 8, 64 * 1024 * 1024)
    if vmem_limit_bytes is None:
        vmem_limit_bytes = min(vmem_cap * 3 // 4, 96 * 1024 * 1024)

    def footprint(t):
        # 2 x-buffers + weights counted as double-buffered (conservative:
        # Mosaic may allocate two buffers even for grid-invariant blocks)
        # + 2 double-buffered outputs.
        return (x_item * 2 * t * K
                + w_item * 2 * 2 * K * E
                + o_item * 2 * 2 * t * E)

    tm = min(tm, _round_up(M, sub))
    # Keep >= 2 grid steps when M is big enough so both of v7x's TensorCores
    # get work (the only "parallel" axis is M). Harmless on v5e/v6e.
    if M >= 256:
        tm = min(tm, _round_up(_cdiv(M, 2), 128))
    while tm > 128 and footprint(tm) > vmem_budget_bytes:
        tm //= 2
    tm = max(sub, _round_up(tm, sub))
    # TODO(synk): if K*E alone exceeds the VMEM budget (very large embeddings),
    # add N ("parallel") and K ("arbitrary" + f32 accumulator) grid axes
    # instead of only shrinking tm.

    # Ragged last M-tile is handled by Pallas (OOB rows never written back);
    # no jnp.pad copy of the input.
    grid = (pl.cdiv(M, tm),)

    flops = 2 * M * K * (2 * E)
    bytes_accessed = x_item * M * K + w_item * 2 * K * E + o_item * 2 * M * E

    mem2d, val2d = pl.pallas_call(
        _fact_encoder_kernel,
        out_shape=(
            jax.ShapeDtypeStruct((M, E), out_dtype),
            jax.ShapeDtypeStruct((M, E), out_dtype),
        ),
        grid_spec=pltpu.PrefetchScalarGridSpec(
            num_scalar_prefetch=0,
            grid=grid,
            in_specs=[
                # x tiles pipeline along M.
                pl.BlockSpec((tm, K), lambda i: (i, 0)),
                # Grid-invariant weights: stay resident in VMEM, no re-DMA.
                pl.BlockSpec((K, E), lambda i: (0, 0)),
                pl.BlockSpec((K, E), lambda i: (0, 0)),
            ],
            # Two lane-dense outputs written directly by the kernel.
            out_specs=[
                pl.BlockSpec((tm, E), lambda i: (i, 0)),
                pl.BlockSpec((tm, E), lambda i: (i, 0)),
            ],
        ),
        compiler_params=pltpu.CompilerParams(
            dimension_semantics=("parallel",),
            vmem_limit_bytes=vmem_limit_bytes,
        ),
        cost_estimate=pl.CostEstimate(
            flops=flops, transcendentals=0, bytes_accessed=bytes_accessed
        ),
    )(x2d, wm_t, wv_t)

    memory = mem2d.reshape(*lead, E)
    value = val2d.reshape(*lead, E)
    return memory, value


def fact_encoder(context, w_mem, w_val, *, compute_dtype=jnp.bfloat16, **kwargs):
    """Convenience wrapper taking PyTorch-layout weights (embed, input).

    For repeated calls, run prepare_fact_encoder_weights() once and call
    fact_encoder_fused() directly to avoid a per-call transpose/cast.
    """
    wm_t, wv_t = prepare_fact_encoder_weights(w_mem, w_val, compute_dtype=compute_dtype)
    return fact_encoder_fused(context, wm_t, wv_t, compute_dtype=compute_dtype, **kwargs)


if __name__ == "__main__":
    key = jax.random.PRNGKey(0)
    k_x, k_wm, k_wv = jax.random.split(key, 3)

    batch, seq, input_size, embed_size = 2, 8, 32, 32

    # Deterministic synthetic inputs mimicking nn.Linear weight shapes (out, in).
    context = jax.random.normal(k_x, (batch, seq, input_size), dtype=jnp.float32)
    w_mem = jax.random.normal(k_wm, (embed_size, input_size), dtype=jnp.float32) * 0.1
    w_val = jax.random.normal(k_wv, (embed_size, input_size), dtype=jnp.float32) * 0.1

    # Plain-JAX reference (same as PyTorch bias-free Linear).
    mem_ref = context @ w_mem.T
    val_ref = context @ w_val.T

    # Default fast path: bf16 MXU inputs, f32 accumulation, f32 outputs.
    wm_t, wv_t = prepare_fact_encoder_weights(w_mem, w_val)   # one-time prep
    memory, value = fact_encoder_fused(context, wm_t, wv_t)
    jax.block_until_ready((memory, value))
    assert memory.shape == (batch, seq, embed_size)
    assert value.shape == (batch, seq, embed_size)
    assert jnp.allclose(memory, mem_ref, atol=3e-2, rtol=3e-2)
    assert jnp.allclose(value, val_ref, atol=3e-2, rtol=3e-2)

    # Full-precision path for a tight numerical check.
    memory32, value32 = fact_encoder(context, w_mem, w_val, compute_dtype=jnp.float32)
    jax.block_until_ready((memory32, value32))
    assert jnp.allclose(memory32, mem_ref, atol=1e-5, rtol=1e-5)
    assert jnp.allclose(value32, val_ref, atol=1e-5, rtol=1e-5)

    # NOTE: at these toy shapes (M=16, K=N=32) plain fused XLA would beat any
    # Pallas kernel; the tiled kernel pays off for M in the thousands and
    # embed_size a multiple of 128 (256 preferred on v6e/v7x).
    print("KERNEL_OK")
</pallas_src>

<mosaic_0001>
module attributes {stable_mosaic.version = 11 : i64} {
  func.func @_fact_encoder_kernel(%arg0: i32, %arg1: memref<16x32xbf16, #tpu.memory_space<vmem>>, %arg2: memref<32x32xbf16, #tpu.memory_space<vmem>>, %arg3: memref<32x32xbf16, #tpu.memory_space<vmem>>, %arg4: memref<16x32xf32, #tpu.memory_space<vmem>>, %arg5: memref<16x32xf32, #tpu.memory_space<vmem>>) attributes {dimension_semantics = [#tpu.dimension_semantics<parallel>], iteration_bounds = array<i64: 1>, scalar_prefetch = 0 : i64, scratch_operands = 0 : i64, tpu.core_type = #tpu.core_type<tc>, window_params = [{transform_indices = @transform_0, window_bounds = array<i64: 16, 32>}, {pipeline_mode = #tpu.pipeline_mode<synchronous>, transform_indices = @transform_1, window_bounds = array<i64: 32, 32>}, {pipeline_mode = #tpu.pipeline_mode<synchronous>, transform_indices = @transform_2, window_bounds = array<i64: 32, 32>}, {transform_indices = @transform_3, window_bounds = array<i64: 16, 32>}, {transform_indices = @transform_4, window_bounds = array<i64: 16, 32>}]} {
    %c0 = arith.constant 0 : index
    %c0_0 = arith.constant 0 : index
    %0 = vector.load %arg1[%c0, %c0_0] : memref<16x32xbf16, #tpu.memory_space<vmem>>, vector<16x32xbf16>
    %c0_1 = arith.constant 0 : index
    %c0_2 = arith.constant 0 : index
    %1 = vector.load %arg2[%c0_1, %c0_2] : memref<32x32xbf16, #tpu.memory_space<vmem>>, vector<32x32xbf16>
    %cst = arith.constant dense<0.000000e+00> : vector<16x32xf32>
    %2 = tpu.matmul %0, %1, %cst {dimension_numbers = #tpu.dot_dimension_numbers<[1], [0], [0], [1], [0, 0, 1, 1], [], []>} : vector<16x32xbf16>, vector<32x32xbf16>, vector<16x32xf32> -> vector<16x32xf32>
    %c0_3 = arith.constant 0 : index
    %c0_4 = arith.constant 0 : index
    %3 = vector.load %arg4[%c0_3, %c0_4] : memref<16x32xf32, #tpu.memory_space<vmem>>, vector<16x32xf32>
    tpu.vector_store %arg4[%c0_3, %c0_4], %2 {strides = array<i32>} : memref<16x32xf32, #tpu.memory_space<vmem>>, vector<16x32xf32>,
    %c0_5 = arith.constant 0 : index
    %c0_6 = arith.constant 0 : index
    %4 = vector.load %arg3[%c0_5, %c0_6] : memref<32x32xbf16, #tpu.memory_space<vmem>>, vector<32x32xbf16>
    %cst_7 = arith.constant dense<0.000000e+00> : vector<16x32xf32>
    %5 = tpu.matmul %0, %4, %cst_7 {dimension_numbers = #tpu.dot_dimension_numbers<[1], [0], [0], [1], [0, 0, 1, 1], [], []>} : vector<16x32xbf16>, vector<32x32xbf16>, vector<16x32xf32> -> vector<16x32xf32>
    %c0_8 = arith.constant 0 : index
    %c0_9 = arith.constant 0 : index
    %6 = vector.load %arg5[%c0_8, %c0_9] : memref<16x32xf32, #tpu.memory_space<vmem>>, vector<16x32xf32>
    tpu.vector_store %arg5[%c0_8, %c0_9], %5 {strides = array<i32>} : memref<16x32xf32, #tpu.memory_space<vmem>>, vector<16x32xf32>,
    return
  }
  func.func @transform_0(%arg0: i32) -> (i32, i32) {
    %c0_i32 = arith.constant 0 : i32
    %c0_i32_0 = arith.constant 0 : i32
    return %arg0, %c0_i32 : i32, i32
  }
  func.func @transform_1(%arg0: i32) -> (i32, i32) {
    %c0_i32 = arith.constant 0 : i32
    %c0_i32_0 = arith.constant 0 : i32
    %c0_i32_1 = arith.constant 0 : i32
    return %c0_i32, %c0_i32_0 : i32, i32
  }
  func.func @transform_2(%arg0: i32) -> (i32, i32) {
    %c0_i32 = arith.constant 0 : i32
    %c0_i32_0 = arith.constant 0 : i32
    %c0_i32_1 = arith.constant 0 : i32
    return %c0_i32, %c0_i32_0 : i32, i32
  }
  func.func @transform_3(%arg0: i32) -> (i32, i32) {
    %c0_i32 = arith.constant 0 : i32
    %c0_i32_0 = arith.constant 0 : i32
    return %arg0, %c0_i32 : i32, i32
  }
  func.func @transform_4(%arg0: i32) -> (i32, i32) {
    %c0_i32 = arith.constant 0 : i32
    %c0_i32_0 = arith.constant 0 : i32
    return %arg0, %c0_i32 : i32, i32
  }
}

</mosaic_0001>

<llo_original>
// kernel: tpu_custom_call.1
$region0: #{tpu_custom_call.1}
  #allocation0 [shape = 'u32[]', space=smem, size = 0x4, offset = 0x4, fixed_abs, tag = 'smem constant byte address 0x4 - core index']
  #allocation1 [shape = 'u32[72,128]{1,0:T(1,128)}', space=vmem, size = 0x9000, scoped, tag = 'internal scratch']
  %s0 = inlined_call_operand.hbm [shape: bf16[16,32], index: 0, kind: input, shape index: {}]
  %s1 = inlined_call_operand.hbm [shape: bf16[32,32], index: 1, kind: input, shape index: {}]
  %s2 = inlined_call_operand.hbm [shape: bf16[32,32], index: 2, kind: input, shape index: {}]
  %s3 = inlined_call_operand.hbm [shape: f32[16,32], index: 3, kind: output, shape index: {0}]
  %s4 = inlined_call_operand.hbm [shape: f32[16,32], index: 4, kind: output, shape index: {1}]
  %5 = xla_tuple %s3, %s4
  %s6 = sld [smem:[#allocation0]]
  $region42: #{tpu_custom_call.1} parent=0
    _
  %s8 = ssub.s32 1, %s6
  %s9 = scalar_select 0, %s8, %s6
  $region1: #{tpu_custom_call.1} parent=0
    #allocation2 [shape = 'u8[4096]{0}', space=vmem, size = 0x1000, scoped, tag = 'input window, operand 0, single buffered']
    #allocation3 [shape = 's32[1]{0}', space=sflag, size = 0x4, scoped, tag = 'scoped memory for tpu_custom_call.1']
    #allocation4 [shape = 's32[1]{0}', space=sflag, size = 0x4, scoped, tag = 'scoped memory for tpu_custom_call.1']
    #allocation5 [shape = 'u8[8192]{0}', space=vmem, size = 0x2000, scoped, tag = 'input window, operand 1, single buffered']
    #allocation6 [shape = 's32[1]{0}', space=sflag, size = 0x4, scoped, tag = 'scoped memory for tpu_custom_call.1']
    #allocation7 [shape = 'u8[8192]{0}', space=vmem, size = 0x2000, scoped, tag = 'input window, operand 2, single buffered']
    #allocation8 [shape = 'u8[8192]{0}', space=vmem, size = 0x2000, scoped, tag = 'output window, operand 0, single buffered']
    #allocation9 [shape = 'u8[8192]{0}', space=vmem, size = 0x2000, scoped, tag = 'output window, operand 1, single buffered']
    #allocation10 [shape = 's32[1]{0}', space=sflag, size = 0x4, scoped, tag = 'scoped memory for tpu_custom_call.1']
    %10 = vsyncpa [#allocation3], 0
    %11 = vsyncpa [#allocation6], 0
    %12 = vsyncpa [#allocation4], 0
    %13 = vsyncpa [#allocation10], 0
    // Predicated region
    $region2: #{tpu_custom_call.1} parent=1 // pred_check
      _
    $region3: #{tpu_custom_call.1} parent=1 // pred_check_branch
      %15 = sbr.rel (0) target = $region5
    $region4: #{tpu_custom_call.1} parent=1 // pred_region
      %17 = vsyncadd [#allocation3], 0
      %s18 = sshll.u32 %s0, 4
      %s19 = int_to_ptr.hbm [resolvable:$true] %s18
      %s20 = sshll.u32 [#allocation2], 4
      %s21 = int_to_ptr.vmem [resolvable:$true] %s20
      %26 = dma.hbm_to_vmem [thread:$0]  %s19, 128, %s21, [#allocation3], 64, 64, 4
    $region5: #{tpu_custom_call.1} parent=1 // pred_fallthru
      _
    // Predicated region
    $region6: #{tpu_custom_call.1} parent=1 // pred_check
      _
    $region7: #{tpu_custom_call.1} parent=1 // pred_check_branch
      %28 = sbr.rel (0) target = $region9
    $region8: #{tpu_custom_call.1} parent=1 // pred_region
      %30 = vsyncadd [#allocation6], 0
      %s31 = sshll.u32 %s1, 4
      %s32 = int_to_ptr.hbm [resolvable:$true] %s31
      %s33 = sshll.u32 [#allocation5], 4
      %s34 = int_to_ptr.vmem [resolvable:$true] %s33
      %39 = dma.hbm_to_vmem [thread:$0]  %s32, 256, %s34, [#allocation6], 64, 64, 4
    $region9: #{tpu_custom_call.1} parent=1 // pred_fallthru
      _
    // Predicated region
    $region10: #{tpu_custom_call.1} parent=1 // pred_check
      _
    $region11: #{tpu_custom_call.1} parent=1 // pred_check_branch
      %41 = sbr.rel (0) target = $region13
    $region12: #{tpu_custom_call.1} parent=1 // pred_region
      %43 = vsyncadd [#allocation6], 0
      %s44 = sshll.u32 %s2, 4
      %s45 = int_to_ptr.hbm [resolvable:$true] %s44
      %s46 = sshll.u32 [#allocation7], 4
      %s47 = int_to_ptr.vmem [resolvable:$true] %s46
      %52 = dma.hbm_to_vmem [thread:$0]  %s45, 256, %s47, [#allocation6], 64, 64, 4
    $region13: #{tpu_custom_call.1} parent=1 // pred_fallthru
      _
    // Predicated region
    $region14: #{tpu_custom_call.1} parent=1 // pred_check
      _
    $region15: #{tpu_custom_call.1} parent=1 // pred_check_branch
      %54 = sbr.rel (0) target = $region17
    $region16: #{tpu_custom_call.1} parent=1 // pred_region
      %56 = dma.done [#allocation3], 128
    $region17: #{tpu_custom_call.1} parent=1 // pred_fallthru
      _
    // Predicated region
    $region18: #{tpu_custom_call.1} parent=1 // pred_check
      _
    $region19: #{tpu_custom_call.1} parent=1 // pred_check_branch
      %58 = sbr.rel (0) target = $region21
    $region20: #{tpu_custom_call.1} parent=1 // pred_region
      %60 = dma.done [#allocation6], 256
    $region21: #{tpu_custom_call.1} parent=1 // pred_fallthru
      _
    // Predicated region
    $region22: #{tpu_custom_call.1} parent=1 // pred_check
      _
    $region23: #{tpu_custom_call.1} parent=1 // pred_check_branch
      %62 = sbr.rel (0) target = $region25
    $region24: #{tpu_custom_call.1} parent=1 // pred_region
      %64 = dma.done [#allocation6], 256
    $region25: #{tpu_custom_call.1} parent=1 // pred_fallthru
      _
    %v66 = vld [vmem:[#allocation2] sm:$0xf]
    %v67 = vld [vmem:[#allocation2 + $0x4] sm:$0xf]
    %v68 = vld [vmem:[#allocation5] sm:$0xf]
    %v69 = vld [vmem:[#allocation5 + $0x4] sm:$0xf]
    %v70 = vld [vmem:[#allocation5 + $0x8] sm:$0xf]
    %v71 = vld [vmem:[#allocation5 + $0xc] sm:$0xf]
    %v74 = vunpack.c.l.b16 %v66
    %v75 = vunpack.c.l.b16 %v67
    %v76 = vpack.c.b16 %v75, %v74
    %v81 = vunpack.c.l.b16 %v68
    %v82 = vunpack.c.l.b16 %v69
    %v83 = vunpack.c.l.b16 %v70
    %v84 = vunpack.c.l.b16 %v71
    %v85 = vpack.c.b16 %v82, %v81
    %v86 = vpack.c.b16 %v84, %v83
    %vm89 = vcmask 261120
    %v91 = vsel %vm89, %v76, 0
    %93 = vmatpush.bf16.msra.mxu0 0
    %94 = vmatpush.bf16.msra.mxu0 0
    %95 = vmatpush.bf16.msra.mxu0 0
    %96 = vmatpush.bf16.msra.mxu0 0
    %97 = vmatpush.bf16.msra.mxu0 0
    %98 = vmatpush.bf16.msra.mxu0 0
    %99 = vmatpush.bf16.msra.mxu0 %v86
    %100 = vmatpush.bf16.msra.mxu0 %v85
    %101 = vmatmul.bf16.gmra.mxu0 %v91
    %v102 = vpop.f32.mrf.mxu0
    %v103 = vadd.f32 0.0, %v102
    %v104 = vpop.f32.mrf.mxu0
    %v105 = vadd.f32 0.0, %v104
    %106 = vdwg.mxu0
    %107 = vst.msk [vmem:[#allocation8] sm:$0xff] %vm89, %v103
    %108 = vst.msk [vmem:[#allocation8 + $0x8] sm:$0xff] %vm89, %v105
    %v109 = vld [vmem:[#allocation7] sm:$0xf]
    %v110 = vld [vmem:[#allocation7 + $0x4] sm:$0xf]
    %v111 = vld [vmem:[#allocation7 + $0x8] sm:$0xf]
    %v112 = vld [vmem:[#allocation7 + $0xc] sm:$0xf]
    %v117 = vunpack.c.l.b16 %v109
    %v118 = vunpack.c.l.b16 %v110
    %v119 = vunpack.c.l.b16 %v111
    %v120 = vunpack.c.l.b16 %v112
    %v121 = vpack.c.b16 %v118, %v117
    %v122 = vpack.c.b16 %v120, %v119
    %125 = vmatpush.bf16.msra.mxu0 0
    %126 = vmatpush.bf16.msra.mxu0 0
    %127 = vmatpush.bf16.msra.mxu0 0
    %128 = vmatpush.bf16.msra.mxu0 0
    %129 = vmatpush.bf16.msra.mxu0 0
    %130 = vmatpush.bf16.msra.mxu0 0
    %131 = vmatpush.bf16.msra.mxu0 %v122
    %132 = vmatpush.bf16.msra.mxu0 %v121
    %133 = vmatmul.bf16.gmra.mxu0 %v91
    %v134 = vpop.f32.mrf.mxu0
    %v135 = vadd.f32 0.0, %v134
    %v136 = vpop.f32.mrf.mxu0
    %v137 = vadd.f32 0.0, %v136
    %138 = vdwg.mxu0
    %139 = vst.msk [vmem:[#allocation9] sm:$0xff] %vm89, %v135
    %140 = vst.msk [vmem:[#allocation9 + $0x8] sm:$0xff] %vm89, %v137
    // Predicated region
    $region26: #{tpu_custom_call.1} parent=1 // pred_check
      _
    $region27: #{tpu_custom_call.1} parent=1 // pred_check_branch
      %142 = sbr.rel (0) target = $region29
    $region28: #{tpu_custom_call.1} parent=1 // pred_region
      %144 = vsyncadd [#allocation4], 0
      %s145 = sshll.u32 [#allocation8], 4
      %s146 = int_to_ptr.vmem [resolvable:$true] %s145
      %s147 = sshll.u32 %s3, 4
      %s148 = int_to_ptr.hbm [resolvable:$true] %s147
      %153 = dma.vmem_to_hbm [thread:$0]  %s146, 256, %s148, [#allocation4], 128, 128, 8
    $region29: #{tpu_custom_call.1} parent=1 // pred_fallthru
      _
    // Predicated region
    $region30: #{tpu_custom_call.1} parent=1 // pred_check
      _
    $region31: #{tpu_custom_call.1} parent=1 // pred_check_branch
      %155 = sbr.rel (0) target = $region33
    $region32: #{tpu_custom_call.1} parent=1 // pred_region
      %157 = vsyncadd [#allocation10], 0
      %s158 = sshll.u32 [#allocation9], 4
      %s159 = int_to_ptr.vmem [resolvable:$true] %s158
      %s160 = sshll.u32 %s4, 4
      %s161 = int_to_ptr.hbm [resolvable:$true] %s160
      %166 = dma.vmem_to_hbm [thread:$0]  %s159, 256, %s161, [#allocation10], 128, 128, 8
    $region33: #{tpu_custom_call.1} parent=1 // pred_fallthru
      _
    // Predicated region
    $region34: #{tpu_custom_call.1} parent=1 // pred_check
      _
    $region35: #{tpu_custom_call.1} parent=1 // pred_check_branch
      %168 = sbr.rel (0) target = $region37
    $region36: #{tpu_custom_call.1} parent=1 // pred_region
      %170 = dma.done [#allocation4], 256
    $region37: #{tpu_custom_call.1} parent=1 // pred_fallthru
      _
    // Predicated region
    $region38: #{tpu_custom_call.1} parent=1 // pred_check
      _
    $region39: #{tpu_custom_call.1} parent=1 // pred_check_branch
      %172 = sbr.rel (0) target = $region41
    $region40: #{tpu_custom_call.1} parent=1 // pred_region
      %174 = dma.done [#allocation10], 256
    $region41: #{tpu_custom_call.1} parent=1 // pred_fallthru
      _
    %175 = vsyncpa [#allocation3], 1
    %176 = vsyncpa [#allocation6], 1
    %177 = vsyncpa [#allocation4], 1
    %178 = vsyncpa [#allocation10], 1

</llo_original>
